<compile_context>
chip_gen: v5e
topology: v5e:2x2
jax: 0.10.0
libtpu: 0.0.40
codegen_flags: <defaults>
</compile_context>

<pallas_src>
import functools

import jax
import jax.numpy as jnp
from jax.experimental import pallas as pl
from jax.experimental.pallas import tpu as pltpu

_LANE = 128
# Above the default scoped limits (16/32 MiB) but safely under v7x's 64 MiB physical.
_VMEM_LIMIT = 48 * 1024 * 1024


def _round_up(x, m):
    return ((x + m - 1) // m) * m


def _conv_stats_kernel(p_ref, w_ref, y_ref, stats_ref, *, use_relu):
    """One M-tile: bf16 matmul (+ReLU) -> f32 y tile + per-tile sum / sum-of-squares."""
    y = jnp.dot(p_ref[...], w_ref[...], preferred_element_type=jnp.float32)  # MXU
    if use_relu:
        y = jnp.maximum(y, 0.0)                      # epilogue stays f32 (v5e-safe)
    y_ref[...] = y
    s1 = jnp.sum(y, axis=0, keepdims=True)           # (1, CO_pad) partial sum
    s2 = jnp.sum(y * y, axis=0, keepdims=True)       # (1, CO_pad) partial sum of squares
    pad = jnp.zeros((6, y.shape[1]), jnp.float32)
    stats_ref[...] = jnp.concatenate([s1, s2, pad], axis=0)   # (8, CO_pad) aligned block


def _bn_apply_kernel(y_ref, scale_ref, shift_ref, o_ref):
    """One M-tile: o = y * scale + shift (BN affine folded to 2 ops/element)."""
    o_ref[...] = (y_ref[...] * scale_ref[...] + shift_ref[...]).astype(o_ref.dtype)


def batchnorm_conv1d(x, weight, gamma, beta, *, stride, padding,
                     eps=1e-3, activation="relu", tile_m=512):
    """x: (N, C_in, L) f32; weight: (C_out, C_in, K); gamma/beta: (C_out,)."""
    N, C_in, L = x.shape
    C_out, _, K = weight.shape

    # ---- glue: zero-pad + im2col, emitted directly in bf16 ----
    x_bf = x.astype(jnp.bfloat16)
    x_p = jnp.pad(x_bf, ((0, 0), (0, 0), (padding, padding)))
    L_pad = L + 2 * padding
    L_out = (L_pad - K) // stride + 1
    gather_idx = jnp.arange(L_out)[:, None] * stride + jnp.arange(K)[None, :]  # (L_out, K)
    patches = x_p[:, :, gather_idx]                                  # (N, C_in, L_out, K)
    patches = patches.transpose(0, 2, 1, 3).reshape(N * L_out, C_in * K)

    M = N * L_out
    CK = C_in * K
    CK_pad = _round_up(CK, _LANE)                  # MXU contraction dim -> multiple of 128
    CO_pad = _round_up(C_out, _LANE)               # lane-dense output channels
    tile_m = min(tile_m, _round_up(M, 16))         # sublane-aligned for bf16(16)/f32(8)
    M_pad = _round_up(M, tile_m)
    num_tiles = M_pad // tile_m

    # Zero-padding rows/cols: zero patch rows give zero y rows (also after ReLU), so they
    # contribute nothing to the stats sums; we divide by the TRUE M below.
    patches = jnp.pad(patches, ((0, M_pad - M), (0, CK_pad - CK)))
    w2 = jnp.pad(weight.astype(jnp.bfloat16).reshape(C_out, CK).T,
                 ((0, CK_pad - CK), (0, CO_pad - C_out)))            # (CK_pad, CO_pad)
    gamma_p = jnp.pad(gamma.astype(jnp.float32), (0, CO_pad - C_out))
    beta_p = jnp.pad(beta.astype(jnp.float32), (0, CO_pad - C_out))

    use_relu = activation == "relu"

    # ---------------- pass 1: conv(+ReLU) + per-tile stats ----------------
    p1_cost = pl.CostEstimate(
        flops=2 * M_pad * CK_pad * CO_pad,
        transcendentals=0,
        bytes_accessed=(M_pad * CK_pad * 2 + CK_pad * CO_pad * 2
                        + M_pad * CO_pad * 4 + num_tiles * 8 * CO_pad * 4))

    y_full, stats = pl.pallas_call(
        functools.partial(_conv_stats_kernel, use_relu=use_relu),
        grid=(num_tiles,),
        in_specs=[
            pl.BlockSpec((tile_m, CK_pad), lambda i: (i, 0)),   # streamed patch tiles (bf16)
            pl.BlockSpec((CK_pad, CO_pad), lambda i: (0, 0)),   # resident weight (bf16)
        ],
        out_specs=[
            pl.BlockSpec((tile_m, CO_pad), lambda i: (i, 0)),   # y tiles, lane-dense f32
            pl.BlockSpec((8, CO_pad), lambda i: (i, 0)),        # per-tile partial stats
        ],
        out_shape=[
            jax.ShapeDtypeStruct((M_pad, CO_pad), jnp.float32),
            jax.ShapeDtypeStruct((num_tiles * 8, CO_pad), jnp.float32),
        ],
        compiler_params=pltpu.CompilerParams(
            dimension_semantics=("parallel",),
            vmem_limit_bytes=_VMEM_LIMIT),
        cost_estimate=p1_cost,
    )(patches, w2)

    # ---------------- tiny JAX glue: combine stats, fold BN affine ----------------
    stats = stats.reshape(num_tiles, 8, CO_pad)
    total_sum = jnp.sum(stats[:, 0, :], axis=0)
    total_sq = jnp.sum(stats[:, 1, :], axis=0)
    mean = total_sum / M                                         # true row count
    var = jnp.maximum(total_sq / M - mean * mean, 0.0)           # biased var (PyTorch BN)
    inv = jax.lax.rsqrt(var + eps)
    scale = (gamma_p * inv).reshape(1, CO_pad)
    shift = (beta_p - mean * gamma_p * inv).reshape(1, CO_pad)

    # ---------------- pass 2: normalize ----------------
    p2_cost = pl.CostEstimate(
        flops=2 * M_pad * CO_pad,
        transcendentals=0,
        bytes_accessed=2 * M_pad * CO_pad * 4 + 2 * CO_pad * 4)

    out_flat = pl.pallas_call(
        _bn_apply_kernel,
        grid=(num_tiles,),
        in_specs=[
            pl.BlockSpec((tile_m, CO_pad), lambda i: (i, 0)),
            pl.BlockSpec((1, CO_pad), lambda i: (0, 0)),
            pl.BlockSpec((1, CO_pad), lambda i: (0, 0)),
        ],
        out_specs=pl.BlockSpec((tile_m, CO_pad), lambda i: (i, 0)),
        out_shape=jax.ShapeDtypeStruct((M_pad, CO_pad), jnp.float32),
        compiler_params=pltpu.CompilerParams(
            dimension_semantics=("parallel",),
            vmem_limit_bytes=_VMEM_LIMIT),
        cost_estimate=p2_cost,
    )(y_full, scale, shift)

    # Back to PyTorch NCL layout.
    # TODO(synk): skip this transpose (one extra HBM read+write) if downstream accepts NLC.
    return out_flat[:M, :C_out].reshape(N, L_out, C_out).transpose(0, 2, 1)


def _reference(x, weight, gamma, beta, *, stride, padding, eps, activation):
    y = jax.lax.conv_general_dilated(
        x, weight, window_strides=(stride,), padding=[(padding, padding)],
        dimension_numbers=("NCH", "OIH", "NCH"))
    if activation == "relu":
        y = jnp.maximum(y, 0.0)
    mean = jnp.mean(y, axis=(0, 2), keepdims=True)
    var = jnp.mean((y - mean) ** 2, axis=(0, 2), keepdims=True)
    return (y - mean) * jax.lax.rsqrt(var + eps) * gamma[None, :, None] + beta[None, :, None]


if __name__ == "__main__":
    # Module hyper-params (small shapes consistent with the PyTorch module)
    N, C_in, L = 2, 4, 16
    C_out, K, stride, padding = 8, 3, 1, 1
    eps = 1e-3

    key = jax.random.PRNGKey(0)
    kx, kw = jax.random.split(key)
    x = jax.random.normal(kx, (N, C_in, L), dtype=jnp.float32)
    weight = jax.random.normal(kw, (C_out, C_in, K), dtype=jnp.float32) * 0.1
    gamma = jnp.ones((C_out,), dtype=jnp.float32)   # PyTorch BN default init
    beta = jnp.zeros((C_out,), dtype=jnp.float32)

    out = batchnorm_conv1d(x, weight, gamma, beta,
                           stride=stride, padding=padding, eps=eps, activation="relu")
    out = jax.block_until_ready(out)
    assert out.shape == (N, C_out, L)  # L_out == L for K=3, stride=1, pad=1

    # Check 1: reference fed the same bf16-rounded conv inputs (matches the kernel's
    # MXU numerics), everything else f32 -> tight tolerance.
    xq = x.astype(jnp.bfloat16).astype(jnp.float32)
    wq = weight.astype(jnp.bfloat16).astype(jnp.float32)
    ref_bf = _reference(xq, wq, gamma, beta, stride=stride, padding=padding,
                        eps=eps, activation="relu")
    assert jnp.allclose(out, ref_bf, atol=5e-3, rtol=5e-3), "mismatch vs bf16-matched reference"

    # Check 2: full-f32 reference, loose tolerance to absorb the bf16 MXU inputs.
    ref_f32 = _reference(x, weight, gamma, beta, stride=stride, padding=padding,
                         eps=eps, activation="relu")
    assert jnp.allclose(out, ref_f32, atol=1e-1, rtol=1e-1), "mismatch vs f32 reference"

    print("KERNEL_OK")
</pallas_src>

<mosaic_0001>
module attributes {stable_mosaic.version = 11 : i64} {
  func.func @_conv_stats_kernel(%arg0: i32, %arg1: memref<32x128xbf16, #tpu.memory_space<vmem>>, %arg2: memref<128x128xbf16, #tpu.memory_space<vmem>>, %arg3: memref<32x128xf32, #tpu.memory_space<vmem>>, %arg4: memref<8x128xf32, #tpu.memory_space<vmem>>) attributes {dimension_semantics = [#tpu.dimension_semantics<parallel>], iteration_bounds = array<i64: 1>, scalar_prefetch = 0 : i64, scratch_operands = 0 : i64, tpu.core_type = #tpu.core_type<tc>, window_params = [{transform_indices = @transform_0, window_bounds = array<i64: 32, 128>}, {pipeline_mode = #tpu.pipeline_mode<synchronous>, transform_indices = @transform_1, window_bounds = array<i64: 128, 128>}, {transform_indices = @transform_2, window_bounds = array<i64: 32, 128>}, {transform_indices = @transform_3, window_bounds = array<i64: 8, 128>}]} {
    %c0 = arith.constant 0 : index
    %c0_0 = arith.constant 0 : index
    %0 = vector.load %arg1[%c0, %c0_0] : memref<32x128xbf16, #tpu.memory_space<vmem>>, vector<32x128xbf16>
    %c0_1 = arith.constant 0 : index
    %c0_2 = arith.constant 0 : index
    %1 = vector.load %arg2[%c0_1, %c0_2] : memref<128x128xbf16, #tpu.memory_space<vmem>>, vector<128x128xbf16>
    %cst = arith.constant dense<0.000000e+00> : vector<32x128xf32>
    %2 = tpu.matmul %0, %1, %cst {dimension_numbers = #tpu.dot_dimension_numbers<[1], [0], [0], [1], [0, 0, 1, 1], [], []>} : vector<32x128xbf16>, vector<128x128xbf16>, vector<32x128xf32> -> vector<32x128xf32>
    %cst_3 = arith.constant 0.000000e+00 : f32
    %3 = vector.broadcast %cst_3 : f32 to vector<32x128xf32>
    %4 = arith.maximumf %2, %3 : vector<32x128xf32>
    %c0_4 = arith.constant 0 : index
    %c0_5 = arith.constant 0 : index
    %5 = vector.load %arg3[%c0_4, %c0_5] : memref<32x128xf32, #tpu.memory_space<vmem>>, vector<32x128xf32>
    tpu.vector_store %arg3[%c0_4, %c0_5], %4 {strides = array<i32>} : memref<32x128xf32, #tpu.memory_space<vmem>>, vector<32x128xf32>,
    %cst_6 = arith.constant dense<0.000000e+00> : vector<128xf32>
    %6 = vector.multi_reduction <add>, %4, %cst_6 [0] : vector<32x128xf32> to vector<128xf32>
    %7 = vector.shape_cast %6 : vector<128xf32> to vector<1x128xf32>
    %8 = arith.mulf %4, %4 : vector<32x128xf32>
    %cst_7 = arith.constant dense<0.000000e+00> : vector<128xf32>
    %9 = vector.multi_reduction <add>, %8, %cst_7 [0] : vector<32x128xf32> to vector<128xf32>
    %10 = vector.shape_cast %9 : vector<128xf32> to vector<1x128xf32>
    %cst_8 = arith.constant 0.000000e+00 : f32
    %11 = vector.broadcast %cst_8 : f32 to vector<6x128xf32>
    %12 = tpu.concatenate %7, %10, %11 in 0 : vector<1x128xf32>, vector<1x128xf32>, vector<6x128xf32> -> vector<8x128xf32>
    %c0_9 = arith.constant 0 : index
    %c0_10 = arith.constant 0 : index
    %13 = vector.load %arg4[%c0_9, %c0_10] : memref<8x128xf32, #tpu.memory_space<vmem>>, vector<8x128xf32>
    tpu.vector_store %arg4[%c0_9, %c0_10], %12 {strides = array<i32>} : memref<8x128xf32, #tpu.memory_space<vmem>>, vector<8x128xf32>,
    return
  }
  func.func @transform_0(%arg0: i32) -> (i32, i32) {
    %c0_i32 = arith.constant 0 : i32
    %c0_i32_0 = arith.constant 0 : i32
    return %arg0, %c0_i32 : i32, i32
  }
  func.func @transform_1(%arg0: i32) -> (i32, i32) {
    %c0_i32 = arith.constant 0 : i32
    %c0_i32_0 = arith.constant 0 : i32
    %c0_i32_1 = arith.constant 0 : i32
    return %c0_i32, %c0_i32_0 : i32, i32
  }
  func.func @transform_2(%arg0: i32) -> (i32, i32) {
    %c0_i32 = arith.constant 0 : i32
    %c0_i32_0 = arith.constant 0 : i32
    return %arg0, %c0_i32 : i32, i32
  }
  func.func @transform_3(%arg0: i32) -> (i32, i32) {
    %c0_i32 = arith.constant 0 : i32
    %c0_i32_0 = arith.constant 0 : i32
    return %arg0, %c0_i32 : i32, i32
  }
}

</mosaic_0001>

<llo_original>
// kernel: tpu_custom_call.1
$region0: #{tpu_custom_call.1}
  #allocation0 [shape = 'u32[]', space=smem, size = 0x4, offset = 0x4, fixed_abs, tag = 'smem constant byte address 0x4 - core index']
  #allocation1 [shape = 'u32[72,128]{1,0:T(1,128)}', space=vmem, size = 0x9000, scoped, tag = 'internal scratch']
  %s0 = inlined_call_operand.hbm [shape: bf16[32,128], index: 0, kind: input, shape index: {}]
  %s1 = inlined_call_operand.hbm [shape: bf16[128,128], index: 1, kind: input, shape index: {}]
  %s2 = inlined_call_operand.hbm [shape: f32[32,128], index: 2, kind: output, shape index: {0}]
  %s3 = inlined_call_operand.hbm [shape: f32[8,128], index: 3, kind: output, shape index: {1}]
  %4 = xla_tuple %s2, %s3
  %s5 = sld [smem:[#allocation0]]
  $region34: #{tpu_custom_call.1} parent=0
    _
  %s7 = ssub.s32 1, %s5
  %s8 = scalar_select 0, %s7, %s5
  $region1: #{tpu_custom_call.1} parent=0
    #allocation2 [shape = 'u8[8192]{0}', space=vmem, size = 0x2000, scoped, tag = 'input window, operand 0, single buffered']
    #allocation3 [shape = 's32[1]{0}', space=sflag, size = 0x4, scoped, tag = 'scoped memory for tpu_custom_call.1']
    #allocation4 [shape = 's32[1]{0}', space=sflag, size = 0x4, scoped, tag = 'scoped memory for tpu_custom_call.1']
    #allocation5 [shape = 'u8[32768]{0}', space=vmem, size = 0x8000, scoped, tag = 'input window, operand 1, single buffered']
    #allocation6 [shape = 's32[1]{0}', space=sflag, size = 0x4, scoped, tag = 'scoped memory for tpu_custom_call.1']
    #allocation7 [shape = 'u8[16384]{0}', space=vmem, size = 0x4000, scoped, tag = 'output window, operand 0, single buffered']
    #allocation8 [shape = 'u8[4096]{0}', space=vmem, size = 0x1000, scoped, tag = 'output window, operand 1, single buffered']
    #allocation9 [shape = 's32[1]{0}', space=sflag, size = 0x4, scoped, tag = 'scoped memory for tpu_custom_call.1']
    %9 = vsyncpa [#allocation3], 0
    %10 = vsyncpa [#allocation6], 0
    %11 = vsyncpa [#allocation4], 0
    %12 = vsyncpa [#allocation9], 0
    // Predicated region
    $region2: #{tpu_custom_call.1} parent=1 // pred_check
      _
    $region3: #{tpu_custom_call.1} parent=1 // pred_check_branch
      %14 = sbr.rel (0) target = $region5
    $region4: #{tpu_custom_call.1} parent=1 // pred_region
      %16 = vsyncadd [#allocation3], 0
      %s17 = sshll.u32 %s0, 4
      %s18 = int_to_ptr.hbm [resolvable:$true] %s17
      %s19 = sshll.u32 [#allocation2], 4
      %s20 = int_to_ptr.vmem [resolvable:$true] %s19
      %25 = dma.hbm_to_vmem [thread:$0]  %s18, 256, %s20, [#allocation3], 64, 64, 4
    $region5: #{tpu_custom_call.1} parent=1 // pred_fallthru
      _
    // Predicated region
    $region6: #{tpu_custom_call.1} parent=1 // pred_check
      _
    $region7: #{tpu_custom_call.1} parent=1 // pred_check_branch
      %27 = sbr.rel (0) target = $region9
    $region8: #{tpu_custom_call.1} parent=1 // pred_region
      %29 = vsyncadd [#allocation6], 0
      %s30 = sshll.u32 %s1, 4
      %s31 = int_to_ptr.hbm [resolvable:$true] %s30
      %s32 = sshll.u32 [#allocation5], 4
      %s33 = int_to_ptr.vmem [resolvable:$true] %s32
      %38 = dma.hbm_to_vmem [thread:$0]  %s31, 1024, %s33, [#allocation6], 64, 64, 4
    $region9: #{tpu_custom_call.1} parent=1 // pred_fallthru
      _
    // Predicated region
    $region10: #{tpu_custom_call.1} parent=1 // pred_check
      _
    $region11: #{tpu_custom_call.1} parent=1 // pred_check_branch
      %40 = sbr.rel (0) target = $region13
    $region12: #{tpu_custom_call.1} parent=1 // pred_region
      %42 = dma.done [#allocation3], 256
    $region13: #{tpu_custom_call.1} parent=1 // pred_fallthru
      _
    // Predicated region
    $region14: #{tpu_custom_call.1} parent=1 // pred_check
      _
    $region15: #{tpu_custom_call.1} parent=1 // pred_check_branch
      %44 = sbr.rel (0) target = $region17
    $region16: #{tpu_custom_call.1} parent=1 // pred_region
      %46 = dma.done [#allocation6], 1024
    $region17: #{tpu_custom_call.1} parent=1 // pred_fallthru
      _
    %v47 = vld [vmem:[#allocation2] sm:$0xf]
    %v48 = vld [vmem:[#allocation2 + $0x4] sm:$0xf]
    %v49 = vld [vmem:[#allocation2 + $0x8] sm:$0xf]
    %v50 = vld [vmem:[#allocation2 + $0xc] sm:$0xf]
    %v51 = vld [vmem:[#allocation5] sm:$0xf]
    %v52 = vld [vmem:[#allocation5 + $0x4] sm:$0xf]
    %v53 = vld [vmem:[#allocation5 + $0x8] sm:$0xf]
    %v54 = vld [vmem:[#allocation5 + $0xc] sm:$0xf]
    %v55 = vld [vmem:[#allocation5 + $0x10] sm:$0xf]
    %v56 = vld [vmem:[#allocation5 + $0x14] sm:$0xf]
    %v57 = vld [vmem:[#allocation5 + $0x18] sm:$0xf]
    %v58 = vld [vmem:[#allocation5 + $0x1c] sm:$0xf]
    %v59 = vld [vmem:[#allocation5 + $0x20] sm:$0xf]
    %v60 = vld [vmem:[#allocation5 + $0x24] sm:$0xf]
    %v61 = vld [vmem:[#allocation5 + $0x28] sm:$0xf]
    %v62 = vld [vmem:[#allocation5 + $0x2c] sm:$0xf]
    %v63 = vld [vmem:[#allocation5 + $0x30] sm:$0xf]
    %v64 = vld [vmem:[#allocation5 + $0x34] sm:$0xf]
    %v65 = vld [vmem:[#allocation5 + $0x38] sm:$0xf]
    %v66 = vld [vmem:[#allocation5 + $0x3c] sm:$0xf]
    %v71 = vunpack.c.l.b16 %v47
    %v72 = vunpack.c.l.b16 %v48
    %v73 = vunpack.c.l.b16 %v49
    %v74 = vunpack.c.l.b16 %v50
    %v75 = vpack.c.b16 %v72, %v71
    %v76 = vpack.c.b16 %v74, %v73
    %v95 = vunpack.c.l.b16 %v51
    %v96 = vunpack.c.l.b16 %v52
    %v97 = vunpack.c.l.b16 %v53
    %v98 = vunpack.c.l.b16 %v54
    %v99 = vunpack.c.l.b16 %v55
    %v100 = vunpack.c.l.b16 %v56
    %v101 = vunpack.c.l.b16 %v57
    %v102 = vunpack.c.l.b16 %v58
    %v103 = vunpack.c.l.b16 %v59
    %v104 = vunpack.c.l.b16 %v60
    %v105 = vunpack.c.l.b16 %v61
    %v106 = vunpack.c.l.b16 %v62
    %v107 = vunpack.c.l.b16 %v63
    %v108 = vunpack.c.l.b16 %v64
    %v109 = vunpack.c.l.b16 %v65
    %v110 = vunpack.c.l.b16 %v66
    %v111 = vpack.c.b16 %v96, %v95
    %v112 = vpack.c.b16 %v98, %v97
    %v113 = vpack.c.b16 %v100, %v99
    %v114 = vpack.c.b16 %v102, %v101
    %v115 = vpack.c.b16 %v104, %v103
    %v116 = vpack.c.b16 %v106, %v105
    %v117 = vpack.c.b16 %v108, %v107
    %v118 = vpack.c.b16 %v110, %v109
    %127 = vmatpush.bf16.msra.mxu0 %v118
    %128 = vmatpush.bf16.msra.mxu0 %v117
    %129 = vmatpush.bf16.msra.mxu0 %v116
    %130 = vmatpush.bf16.msra.mxu0 %v115
    %131 = vmatpush.bf16.msra.mxu0 %v114
    %132 = vmatpush.bf16.msra.mxu0 %v113
    %133 = vmatpush.bf16.msra.mxu0 %v112
    %134 = vmatpush.bf16.msra.mxu0 %v111
    %135 = vmatmul.bf16.gmra.mxu0 %v75
    %v136 = vpop.f32.mrf.mxu0
    %v137 = vadd.f32 0.0, %v136
    %v138 = vpop.f32.mrf.mxu0
    %v139 = vadd.f32 0.0, %v138
    %140 = vmatmul.bf16.gmra.mxu0 %v76
    %v141 = vpop.f32.mrf.mxu0
    %v142 = vadd.f32 0.0, %v141
    %v143 = vpop.f32.mrf.mxu0
    %v144 = vadd.f32 0.0, %v143
    %145 = vdwg.mxu0
    %v146 = vmax.f32 %v137, 0.0
    %v147 = vmax.f32 %v139, 0.0
    %v148 = vmax.f32 %v142, 0.0
    %v149 = vmax.f32 %v144, 0.0
    %150 = vst [vmem:[#allocation7] sm:$0xff] %v146
    %151 = vst [vmem:[#allocation7 + $0x8] sm:$0xff] %v147
    %152 = vst [vmem:[#allocation7 + $0x10] sm:$0xff] %v148
    %153 = vst [vmem:[#allocation7 + $0x18] sm:$0xff] %v149
    %v154 = vadd.f32 %v146, %v147
    %v155 = vadd.f32 %v154, %v148
    %v156 = vadd.f32 %v155, %v149
    %v157 = vrot.slane %v156, 4
    %v158 = vadd.f32 %v156, %v157
    %v159 = vrot.slane %v158, 2
    %v160 = vadd.f32 %v158, %v159
    %v161 = vrot.slane %v160, 1
    %v162 = vadd.f32 %v160, %v161
    %v163 = vmul.f32 %v146, %v146
    %v164 = vmul.f32 %v147, %v147
    %v165 = vmul.f32 %v148, %v148
    %v166 = vmul.f32 %v149, %v149
    %v167 = vadd.f32 %v163, %v164
    %v168 = vadd.f32 %v167, %v165
    %v169 = vadd.f32 %v168, %v166
    %v170 = vrot.slane %v169, 4
    %v171 = vadd.f32 %v169, %v170
    %v172 = vrot.slane %v171, 2
    %v173 = vadd.f32 %v171, %v172
    %v174 = vrot.slane %v173, 1
    %v175 = vadd.f32 %v173, %v174
    %vm176 = vcmask 1040384
    %v177 = vsel %vm176, %v162, %v175
    %vm178 = vcmask 1041408
    %v179 = vsel %vm178, %v177, 0.0
    %180 = vst [vmem:[#allocation8] sm:$0xff] %v179
    // Predicated region
    $region18: #{tpu_custom_call.1} parent=1 // pred_check
      _
    $region19: #{tpu_custom_call.1} parent=1 // pred_check_branch
      %182 = sbr.rel (0) target = $region21
    $region20: #{tpu_custom_call.1} parent=1 // pred_region
      %184 = vsyncadd [#allocation4], 0
      %s185 = sshll.u32 [#allocation7], 4
      %s186 = int_to_ptr.vmem [resolvable:$true] %s185
      %s187 = sshll.u32 %s2, 4
      %s188 = int_to_ptr.hbm [resolvable:$true] %s187
      %193 = dma.vmem_to_hbm [thread:$0]  %s186, 512, %s188, [#allocation4], 128, 128, 8
    $region21: #{tpu_custom_call.1} parent=1 // pred_fallthru
      _
    // Predicated region
    $region22: #{tpu_custom_call.1} parent=1 // pred_check
      _
    $region23: #{tpu_custom_call.1} parent=1 // pred_check_branch
      %195 = sbr.rel (0) target = $region25
    $region24: #{tpu_custom_call.1} parent=1 // pred_region
      %197 = vsyncadd [#allocation9], 0
      %s199 = sshll.u32 [#allocation8], 4
      %s200 = int_to_ptr.vmem [resolvable:$true] %s199
      %s201 = sshll.u32 %s3, 4
      %s202 = int_to_ptr.hbm [resolvable:$true] %s201
      %204 = dma.vmem_to_hbm [thread:$0]  %s200, 128, %s202, [#allocation9]
    $region25: #{tpu_custom_call.1} parent=1 // pred_fallthru
      _
    // Predicated region
    $region26: #{tpu_custom_call.1} parent=1 // pred_check
      _
    $region27: #{tpu_custom_call.1} parent=1 // pred_check_branch
      %206 = sbr.rel (0) target = $region29
    $region28: #{tpu_custom_call.1} parent=1 // pred_region
      %208 = dma.done [#allocation4], 512
    $region29: #{tpu_custom_call.1} parent=1 // pred_fallthru
      _
    // Predicated region
    $region30: #{tpu_custom_call.1} parent=1 // pred_check
      _
    $region31: #{tpu_custom_call.1} parent=1 // pred_check_branch
      %210 = sbr.rel (0) target = $region33
    $region32: #{tpu_custom_call.1} parent=1 // pred_region
      %212 = dma.done [#allocation9], 128
    $region33: #{tpu_custom_call.1} parent=1 // pred_fallthru
      _
    %213 = vsyncpa [#allocation3], 1
    %214 = vsyncpa [#allocation6], 1
    %215 = vsyncpa [#allocation4], 1
    %216 = vsyncpa [#allocation9], 1

</llo_original>
